<compile_context>
chip_gen: v5e
topology: v5e:2x2
jax: 0.10.0
libtpu: 0.0.40
codegen_flags: <defaults>
</compile_context>

<pallas_src>
import jax
import jax.numpy as jnp
from jax import lax
from jax.experimental import pallas as pl
from jax.experimental.pallas import tpu as pltpu

_SUBLANE = 8


def _round_up(x, m):
    return (x + m - 1) // m * m


def _vmem_limit_bytes():
    """Scoped-VMEM limit to request: half of physical, capped at 64 MiB."""
    try:
        cap = int(pltpu.get_tpu_info().vmem_capacity_bytes)
    except Exception:
        cap = 64 * 1024 * 1024  # conservative fallback
    return min(cap // 2, 64 * 1024 * 1024)


def _choose_tile_b(n_rows, bytes_per_row, fixed_bytes, vmem_limit, cap):
    """Largest multiple-of-8 batch tile whose pipelined working set fits VMEM,
    nudged toward an even tile count >= 2 on large batches (v7x megacore)."""
    usable = int(vmem_limit * 0.75) - int(fixed_bytes)
    usable = max(usable, _SUBLANE * bytes_per_row)
    tb = (usable // max(bytes_per_row, 1)) // _SUBLANE * _SUBLANE
    tb = max(_SUBLANE, min(tb, cap, _round_up(n_rows, _SUBLANE)))

    rows_pad = _round_up(n_rows, _SUBLANE)
    nt = -(-rows_pad // tb)
    if nt == 1 and rows_pad >= 256:
        # Split a single big tile so ("parallel",) can use both TensorCores.
        tb = _round_up(-(-rows_pad // 2), _SUBLANE)
    elif nt > 1 and nt % 2 == 1:
        # Odd tile count -> one TC idles on the last tile; go one tile finer.
        tb = _round_up(-(-rows_pad // (nt + 1)), _SUBLANE)
    return tb


# --------------------------------------------------------------------------
# Kernels
# --------------------------------------------------------------------------
def _score_tail(h, r, t, T1, o_ref):
    """scores = sum(h*r*t*concat(T1, ones), axis=1), ones never materialized."""
    t_dim = T1.shape[1]
    emb_dim = h.shape[1]
    hrt = h * r * t                                               # (tb, D)
    s = jnp.sum(hrt[:, :t_dim] * T1, axis=1, keepdims=True)
    if t_dim < emb_dim:                     # static, resolved at trace time
        s = s + jnp.sum(hrt[:, t_dim:], axis=1, keepdims=True)
    o_ref[...] = s


def _gathered_kernel(h_ref, r_ref, t_ref, T1_ref, o_ref):
    """Unfused path: rows were gathered by XLA outside the kernel."""
    _score_tail(h_ref[...], r_ref[...], t_ref[...], T1_ref[...], o_ref)


def _onehot_rows(idx_col, table):
    """Exact in-kernel row gather for a VMEM-resident table.

    idx_col: (tb, 1) int32, table: (E, D) f32 -> (tb, D) f32.
    one_hot @ table is exact (0/1 weights) and rides the otherwise-idle MXU;
    it avoids relying on a general gather lowering inside Mosaic.
    """
    n = idx_col.shape[0]
    num_rows = table.shape[0]
    onehot = (idx_col == lax.broadcasted_iota(jnp.int32, (n, num_rows), 1))
    onehot = onehot.astype(table.dtype)
    return jnp.dot(onehot, table, preferred_element_type=jnp.float32)


def _fused_kernel(hid_ref, rid_ref, tid_ref, did_ref,
                  ent_ref, rel_ref, tim_ref, o_ref):
    """Fused path: tables live in VMEM; gathers happen inside the kernel."""
    ent = ent_ref[...]
    rel = rel_ref[...]
    tim = tim_ref[...]
    h = _onehot_rows(hid_ref[...], ent)
    r = _onehot_rows(rid_ref[...], rel)
    t = _onehot_rows(tid_ref[...], ent)
    T1 = _onehot_rows(did_ref[...], tim)
    _score_tail(h, r, t, T1, o_ref)


# --------------------------------------------------------------------------
# Wrapper
# --------------------------------------------------------------------------
def t_distmult_scores(ent_embs, rel_embs, tim_embs, heads, rels, tails, dates,
                      *, fuse=None):
    """Batched DistMult score: sum over emb_dim of h*r*t*[T1 | 1]."""
    B = heads.shape[0]
    D = ent_embs.shape[1]
    t_dim = tim_embs.shape[1]

    table_bytes = 4 * (ent_embs.size + rel_embs.size + tim_embs.size)
    max_rows = max(ent_embs.shape[0], rel_embs.shape[0], tim_embs.shape[0])
    if fuse is None:
        # Fuse the gathers whenever the tables comfortably fit in VMEM.
        fuse = (table_bytes <= (2 << 20)) and (max_rows <= 1024)

    vmem_limit = _vmem_limit_bytes()

    heads = heads.astype(jnp.int32)
    rels = rels.astype(jnp.int32)
    tails = tails.astype(jnp.int32)
    dates = dates.astype(jnp.int32)

    if fuse:
        # idx streams (2-buf) + out + one-hot temp + gathered rows + hrt temp
        per_row = (2 * 4 + 2) * 4 + (2 * max_rows + 4 * D + t_dim) * 4
        tb = _choose_tile_b(B, per_row, fixed_bytes=2 * table_bytes,
                            vmem_limit=vmem_limit, cap=512)
    else:
        # double-buffered h/r/t/T1 streams + out + hrt temporaries
        per_row = (2 * (3 * D + t_dim) + 2 * D + 2) * 4
        tb = _choose_tile_b(B, per_row, fixed_bytes=0,
                            vmem_limit=vmem_limit, cap=1024)

    B_pad = _round_up(B, tb)
    if B_pad != B:
        # Pad the cheap (B,) index vectors, NOT the gathered (B, D) matrices.
        pad = (0, B_pad - B)
        heads = jnp.pad(heads, pad)
        rels = jnp.pad(rels, pad)
        tails = jnp.pad(tails, pad)
        dates = jnp.pad(dates, pad)

    grid = (B_pad // tb,)
    out_spec = pl.BlockSpec((tb, 1), lambda i: (i, 0))
    compiler_params = pltpu.CompilerParams(
        dimension_semantics=("parallel",),
        vmem_limit_bytes=int(vmem_limit),
    )

    if fuse:
        idx_spec = pl.BlockSpec((tb, 1), lambda i: (i, 0))

        def tab_spec(shape):
            return pl.BlockSpec(shape, lambda i: (0, 0))   # whole table, resident

        cost = pl.CostEstimate(
            flops=int(2 * B_pad * D * (2 * ent_embs.shape[0] + rel_embs.shape[0])
                      + 2 * B_pad * t_dim * tim_embs.shape[0] + 4 * B_pad * D),
            transcendentals=0,
            bytes_accessed=int(table_bytes + B_pad * 4 * 4 + B_pad * 4),
        )
        out = pl.pallas_call(
            _fused_kernel,
            out_shape=jax.ShapeDtypeStruct((B_pad, 1), jnp.float32),
            grid=grid,
            in_specs=[idx_spec, idx_spec, idx_spec, idx_spec,
                      tab_spec(ent_embs.shape), tab_spec(rel_embs.shape),
                      tab_spec(tim_embs.shape)],
            out_specs=out_spec,
            compiler_params=compiler_params,
            cost_estimate=cost,
        )(heads.reshape(B_pad, 1), rels.reshape(B_pad, 1),
          tails.reshape(B_pad, 1), dates.reshape(B_pad, 1),
          ent_embs, rel_embs, tim_embs)
    else:
        # Large-table fallback: XLA gather on already-padded indices, then the
        # elementwise/reduce kernel over batch tiles.
        h = jnp.take(ent_embs, heads, axis=0)      # (B_pad, D)
        r = jnp.take(rel_embs, rels, axis=0)       # (B_pad, D)
        t = jnp.take(ent_embs, tails, axis=0)      # (B_pad, D)
        T1 = jnp.take(tim_embs, dates, axis=0)     # (B_pad, t_dim)

        full_spec = pl.BlockSpec((tb, D), lambda i: (i, 0))
        time_spec = pl.BlockSpec((tb, t_dim), lambda i: (i, 0))
        cost = pl.CostEstimate(
            flops=int(4 * B_pad * D),
            transcendentals=0,
            bytes_accessed=int(B_pad * (3 * D + t_dim + 1) * 4),
        )
        out = pl.pallas_call(
            _gathered_kernel,
            out_shape=jax.ShapeDtypeStruct((B_pad, 1), jnp.float32),
            grid=grid,
            in_specs=[full_spec, full_spec, full_spec, time_spec],
            out_specs=out_spec,
            compiler_params=compiler_params,
            cost_estimate=cost,
        )(h, r, t, T1)

    return out[:B, 0]


def xavier_uniform(key, shape, dtype=jnp.float32):
    # torch xavier_uniform_ on an nn.Embedding weight (num, dim):
    # limit = sqrt(6 / (num + dim)).
    limit = jnp.sqrt(6.0 / (shape[0] + shape[1]))
    return jax.random.uniform(key, shape, dtype, minval=-limit, maxval=limit)


class TDistmultPallas:
    """Inference-mode T_distmult (dropout = identity) with a Pallas score kernel."""

    def __init__(self, num_ent, num_rel, num_time, emb_dim, t_emb_dim, s_emb_dim, key):
        assert emb_dim == t_emb_dim + s_emb_dim
        k1, k2, k3 = jax.random.split(key, 3)
        self.emb_dim = emb_dim
        self.t_emb_dim = t_emb_dim
        self.s_emb_dim = s_emb_dim
        self.ent_embs = xavier_uniform(k1, (num_ent, emb_dim))
        self.rel_embs = xavier_uniform(k2, (num_rel, emb_dim))
        self.tim_embs = xavier_uniform(k3, (num_time, t_emb_dim))

    def __call__(self, heads, rels, tails, dates, fuse=None):
        return t_distmult_scores(self.ent_embs, self.rel_embs, self.tim_embs,
                                 heads, rels, tails, dates, fuse=fuse)


if __name__ == "__main__":
    key = jax.random.PRNGKey(0)
    k_model, k_h, k_r, k_t, k_d = jax.random.split(key, 5)

    num_ent, num_rel, num_time = 10, 5, 7
    emb_dim, t_emb_dim, s_emb_dim = 32, 24, 8
    batch = 8

    model = TDistmultPallas(num_ent, num_rel, num_time,
                            emb_dim, t_emb_dim, s_emb_dim, k_model)

    heads = jax.random.randint(k_h, (batch,), 0, num_ent)
    rels = jax.random.randint(k_r, (batch,), 0, num_rel)
    tails = jax.random.randint(k_t, (batch,), 0, num_ent)
    dates = jax.random.randint(k_d, (batch,), 0, num_time)

    # Default path: tables are tiny -> fused in-kernel gather.
    scores = model(heads, rels, tails, dates)
    # Large-table fallback path (XLA gather + tiled reduce kernel).
    scores_unfused = model(heads, rels, tails, dates, fuse=False)
    jax.block_until_ready((scores, scores_unfused))

    # Pure-JAX reference check (original concat-with-ones formulation).
    h = model.ent_embs[heads]
    r = model.rel_embs[rels]
    t = model.ent_embs[tails]
    T = jnp.concatenate(
        [model.tim_embs[dates], jnp.ones((batch, s_emb_dim), jnp.float32)], axis=1)
    ref = jnp.sum(h * r * t * T, axis=1)

    assert scores.shape == (batch,)
    assert scores_unfused.shape == (batch,)
    assert jnp.allclose(scores, ref, atol=1e-5, rtol=1e-5)
    assert jnp.allclose(scores_unfused, ref, atol=1e-5, rtol=1e-5)

    print("KERNEL_OK")
</pallas_src>

<mosaic_0001>
module attributes {stable_mosaic.version = 11 : i64} {
  func.func @_fused_kernel(%arg0: i32, %arg1: memref<8x1xi32, #tpu.memory_space<vmem>>, %arg2: memref<8x1xi32, #tpu.memory_space<vmem>>, %arg3: memref<8x1xi32, #tpu.memory_space<vmem>>, %arg4: memref<8x1xi32, #tpu.memory_space<vmem>>, %arg5: memref<10x32xf32, #tpu.memory_space<vmem>>, %arg6: memref<5x32xf32, #tpu.memory_space<vmem>>, %arg7: memref<7x24xf32, #tpu.memory_space<vmem>>, %arg8: memref<8x1xf32, #tpu.memory_space<vmem>>) attributes {dimension_semantics = [#tpu.dimension_semantics<parallel>], iteration_bounds = array<i64: 1>, scalar_prefetch = 0 : i64, scratch_operands = 0 : i64, tpu.core_type = #tpu.core_type<tc>, window_params = [{transform_indices = @transform_0, window_bounds = array<i64: 8, 1>}, {transform_indices = @transform_1, window_bounds = array<i64: 8, 1>}, {transform_indices = @transform_2, window_bounds = array<i64: 8, 1>}, {transform_indices = @transform_3, window_bounds = array<i64: 8, 1>}, {pipeline_mode = #tpu.pipeline_mode<synchronous>, transform_indices = @transform_4, window_bounds = array<i64: 10, 32>}, {pipeline_mode = #tpu.pipeline_mode<synchronous>, transform_indices = @transform_5, window_bounds = array<i64: 5, 32>}, {pipeline_mode = #tpu.pipeline_mode<synchronous>, transform_indices = @transform_6, window_bounds = array<i64: 7, 24>}, {transform_indices = @transform_7, window_bounds = array<i64: 8, 1>}]} {
    %c0 = arith.constant 0 : index
    %c0_0 = arith.constant 0 : index
    %0 = vector.load %arg5[%c0, %c0_0] : memref<10x32xf32, #tpu.memory_space<vmem>>, vector<10x32xf32>
    %c0_1 = arith.constant 0 : index
    %c0_2 = arith.constant 0 : index
    %1 = vector.load %arg6[%c0_1, %c0_2] : memref<5x32xf32, #tpu.memory_space<vmem>>, vector<5x32xf32>
    %c0_3 = arith.constant 0 : index
    %c0_4 = arith.constant 0 : index
    %2 = vector.load %arg7[%c0_3, %c0_4] : memref<7x24xf32, #tpu.memory_space<vmem>>, vector<7x24xf32>
    %c0_5 = arith.constant 0 : index
    %c0_6 = arith.constant 0 : index
    %3 = vector.load %arg1[%c0_5, %c0_6] : memref<8x1xi32, #tpu.memory_space<vmem>>, vector<8x1xi32>
    %4 = tpu.iota {dimensions = array<i32: 1>} : vector<8x10xi32>
    %5 = vector.broadcast %3 : vector<8x1xi32> to vector<8x10xi32>
    %6 = arith.cmpi eq, %5, %4 : vector<8x10xi32>
    %7 = arith.extui %6 : vector<8x10xi1> to vector<8x10xi32>
    %8 = arith.sitofp %7 : vector<8x10xi32> to vector<8x10xf32>
    %cst = arith.constant dense<0.000000e+00> : vector<8x32xf32>
    %9 = tpu.matmul %8, %0, %cst {dimension_numbers = #tpu.dot_dimension_numbers<[1], [0], [0], [1], [0, 0, 1, 1], [], []>} : vector<8x10xf32>, vector<10x32xf32>, vector<8x32xf32> -> vector<8x32xf32>
    %c0_7 = arith.constant 0 : index
    %c0_8 = arith.constant 0 : index
    %10 = vector.load %arg2[%c0_7, %c0_8] : memref<8x1xi32, #tpu.memory_space<vmem>>, vector<8x1xi32>
    %11 = tpu.iota {dimensions = array<i32: 1>} : vector<8x5xi32>
    %12 = vector.broadcast %10 : vector<8x1xi32> to vector<8x5xi32>
    %13 = arith.cmpi eq, %12, %11 : vector<8x5xi32>
    %14 = arith.extui %13 : vector<8x5xi1> to vector<8x5xi32>
    %15 = arith.sitofp %14 : vector<8x5xi32> to vector<8x5xf32>
    %cst_9 = arith.constant dense<0.000000e+00> : vector<8x32xf32>
    %16 = tpu.matmul %15, %1, %cst_9 {dimension_numbers = #tpu.dot_dimension_numbers<[1], [0], [0], [1], [0, 0, 1, 1], [], []>} : vector<8x5xf32>, vector<5x32xf32>, vector<8x32xf32> -> vector<8x32xf32>
    %c0_10 = arith.constant 0 : index
    %c0_11 = arith.constant 0 : index
    %17 = vector.load %arg3[%c0_10, %c0_11] : memref<8x1xi32, #tpu.memory_space<vmem>>, vector<8x1xi32>
    %18 = tpu.iota {dimensions = array<i32: 1>} : vector<8x10xi32>
    %19 = vector.broadcast %17 : vector<8x1xi32> to vector<8x10xi32>
    %20 = arith.cmpi eq, %19, %18 : vector<8x10xi32>
    %21 = arith.extui %20 : vector<8x10xi1> to vector<8x10xi32>
    %22 = arith.sitofp %21 : vector<8x10xi32> to vector<8x10xf32>
    %cst_12 = arith.constant dense<0.000000e+00> : vector<8x32xf32>
    %23 = tpu.matmul %22, %0, %cst_12 {dimension_numbers = #tpu.dot_dimension_numbers<[1], [0], [0], [1], [0, 0, 1, 1], [], []>} : vector<8x10xf32>, vector<10x32xf32>, vector<8x32xf32> -> vector<8x32xf32>
    %c0_13 = arith.constant 0 : index
    %c0_14 = arith.constant 0 : index
    %24 = vector.load %arg4[%c0_13, %c0_14] : memref<8x1xi32, #tpu.memory_space<vmem>>, vector<8x1xi32>
    %25 = tpu.iota {dimensions = array<i32: 1>} : vector<8x7xi32>
    %26 = vector.broadcast %24 : vector<8x1xi32> to vector<8x7xi32>
    %27 = arith.cmpi eq, %26, %25 : vector<8x7xi32>
    %28 = arith.extui %27 : vector<8x7xi1> to vector<8x7xi32>
    %29 = arith.sitofp %28 : vector<8x7xi32> to vector<8x7xf32>
    %cst_15 = arith.constant dense<0.000000e+00> : vector<8x24xf32>
    %30 = tpu.matmul %29, %2, %cst_15 {dimension_numbers = #tpu.dot_dimension_numbers<[1], [0], [0], [1], [0, 0, 1, 1], [], []>} : vector<8x7xf32>, vector<7x24xf32>, vector<8x24xf32> -> vector<8x24xf32>
    %31 = arith.mulf %9, %16 : vector<8x32xf32>
    %32 = arith.mulf %31, %23 : vector<8x32xf32>
    %33 = vector.extract_strided_slice %32 {offsets = [0, 0], sizes = [8, 24], strides = [1, 1]} : vector<8x32xf32> to vector<8x24xf32>
    %34 = arith.mulf %33, %30 : vector<8x24xf32>
    %cst_16 = arith.constant dense<0.000000e+00> : vector<8xf32>
    %35 = vector.multi_reduction <add>, %34, %cst_16 [1] : vector<8x24xf32> to vector<8xf32>
    %36 = vector.shape_cast %35 : vector<8xf32> to vector<8x1xf32>
    %37 = vector.extract_strided_slice %32 {offsets = [0, 24], sizes = [8, 8], strides = [1, 1]} : vector<8x32xf32> to vector<8x8xf32>
    %cst_17 = arith.constant dense<0.000000e+00> : vector<8xf32>
    %38 = vector.multi_reduction <add>, %37, %cst_17 [1] : vector<8x8xf32> to vector<8xf32>
    %39 = vector.shape_cast %38 : vector<8xf32> to vector<8x1xf32>
    %40 = arith.addf %36, %39 : vector<8x1xf32>
    %c0_18 = arith.constant 0 : index
    %c0_19 = arith.constant 0 : index
    %41 = vector.load %arg8[%c0_18, %c0_19] : memref<8x1xf32, #tpu.memory_space<vmem>>, vector<8x1xf32>
    tpu.vector_store %arg8[%c0_18, %c0_19], %40 {strides = array<i32>} : memref<8x1xf32, #tpu.memory_space<vmem>>, vector<8x1xf32>,
    return
  }
  func.func @transform_0(%arg0: i32) -> (i32, i32) {
    %c0_i32 = arith.constant 0 : i32
    %c0_i32_0 = arith.constant 0 : i32
    return %arg0, %c0_i32 : i32, i32
  }
  func.func @transform_1(%arg0: i32) -> (i32, i32) {
    %c0_i32 = arith.constant 0 : i32
    %c0_i32_0 = arith.constant 0 : i32
    return %arg0, %c0_i32 : i32, i32
  }
  func.func @transform_2(%arg0: i32) -> (i32, i32) {
    %c0_i32 = arith.constant 0 : i32
    %c0_i32_0 = arith.constant 0 : i32
    return %arg0, %c0_i32 : i32, i32
  }
  func.func @transform_3(%arg0: i32) -> (i32, i32) {
    %c0_i32 = arith.constant 0 : i32
    %c0_i32_0 = arith.constant 0 : i32
    return %arg0, %c0_i32 : i32, i32
  }
  func.func @transform_4(%arg0: i32) -> (i32, i32) {
    %c0_i32 = arith.constant 0 : i32
    %c0_i32_0 = arith.constant 0 : i32
    %c0_i32_1 = arith.constant 0 : i32
    return %c0_i32, %c0_i32_0 : i32, i32
  }
  func.func @transform_5(%arg0: i32) -> (i32, i32) {
    %c0_i32 = arith.constant 0 : i32
    %c0_i32_0 = arith.constant 0 : i32
    %c0_i32_1 = arith.constant 0 : i32
    return %c0_i32, %c0_i32_0 : i32, i32
  }
  func.func @transform_6(%arg0: i32) -> (i32, i32) {
    %c0_i32 = arith.constant 0 : i32
    %c0_i32_0 = arith.constant 0 : i32
    %c0_i32_1 = arith.constant 0 : i32
    return %c0_i32, %c0_i32_0 : i32, i32
  }
  func.func @transform_7(%arg0: i32) -> (i32, i32) {
    %c0_i32 = arith.constant 0 : i32
    %c0_i32_0 = arith.constant 0 : i32
    return %arg0, %c0_i32 : i32, i32
  }
}

</mosaic_0001>

<llo_original>
// kernel: tpu_custom_call.1
$region0: #{tpu_custom_call.1}
  #allocation0 [shape = 'u32[]', space=smem, size = 0x4, offset = 0x4, fixed_abs, tag = 'smem constant byte address 0x4 - core index']
  #allocation1 [shape = 'u32[72,128]{1,0:T(1,128)}', space=vmem, size = 0x9000, scoped, tag = 'internal scratch']
  %s0 = inlined_call_operand.vmem [shape: s32[8,1], index: 0, kind: input, shape index: {}]
  %s1 = inlined_call_operand.vmem [shape: s32[8,1], index: 1, kind: input, shape index: {}]
  %s2 = inlined_call_operand.vmem [shape: s32[8,1], index: 2, kind: input, shape index: {}]
  %s3 = inlined_call_operand.vmem [shape: s32[8,1], index: 3, kind: input, shape index: {}]
  %s4 = inlined_call_operand.vmem [shape: f32[10,32], index: 4, kind: input, shape index: {}]
  %s5 = inlined_call_operand.vmem [shape: f32[5,32], index: 5, kind: input, shape index: {}]
  %s6 = inlined_call_operand.vmem [shape: f32[7,24], index: 6, kind: input, shape index: {}]
  %s7 = inlined_call_operand.vmem [shape: f32[8,1], index: 7, kind: output, shape index: {}]
  %s8 = sld [smem:[#allocation0]]
  $region38: #{tpu_custom_call.1} parent=0
    _
  %s10 = ssub.s32 1, %s8
  %s11 = scalar_select 0, %s10, %s8
  // Predicated region
  $region2: #{tpu_custom_call.1} parent=0 // pred_check
    _
  $region3: #{tpu_custom_call.1} parent=0 // pred_check_branch
    %13 = sbr.rel (0) target = $region5
  $region4: #{tpu_custom_call.1} parent=0 // pred_region
    _
  $region5: #{tpu_custom_call.1} parent=0 // pred_fallthru
    _
  // Predicated region
  $region6: #{tpu_custom_call.1} parent=0 // pred_check
    _
  $region7: #{tpu_custom_call.1} parent=0 // pred_check_branch
    %15 = sbr.rel (0) target = $region9
  $region8: #{tpu_custom_call.1} parent=0 // pred_region
    _
  $region9: #{tpu_custom_call.1} parent=0 // pred_fallthru
    _
  // Predicated region
  $region10: #{tpu_custom_call.1} parent=0 // pred_check
    _
  $region11: #{tpu_custom_call.1} parent=0 // pred_check_branch
    %17 = sbr.rel (0) target = $region13
  $region12: #{tpu_custom_call.1} parent=0 // pred_region
    _
  $region13: #{tpu_custom_call.1} parent=0 // pred_fallthru
    _
  // Predicated region
  $region14: #{tpu_custom_call.1} parent=0 // pred_check
    _
  $region15: #{tpu_custom_call.1} parent=0 // pred_check_branch
    %19 = sbr.rel (0) target = $region17
  $region16: #{tpu_custom_call.1} parent=0 // pred_region
    _
  $region17: #{tpu_custom_call.1} parent=0 // pred_fallthru
    _
  // Predicated region
  $region18: #{tpu_custom_call.1} parent=0 // pred_check
    _
  $region19: #{tpu_custom_call.1} parent=0 // pred_check_branch
    %21 = sbr.rel (0) target = $region21
  $region20: #{tpu_custom_call.1} parent=0 // pred_region
    _
  $region21: #{tpu_custom_call.1} parent=0 // pred_fallthru
    _
  // Predicated region
  $region22: #{tpu_custom_call.1} parent=0 // pred_check
    _
  $region23: #{tpu_custom_call.1} parent=0 // pred_check_branch
    %23 = sbr.rel (0) target = $region25
  $region24: #{tpu_custom_call.1} parent=0 // pred_region
    _
  $region25: #{tpu_custom_call.1} parent=0 // pred_fallthru
    _
  // Predicated region
  $region26: #{tpu_custom_call.1} parent=0 // pred_check
    _
  $region27: #{tpu_custom_call.1} parent=0 // pred_check_branch
    %25 = sbr.rel (0) target = $region29
  $region28: #{tpu_custom_call.1} parent=0 // pred_region
    _
  $region29: #{tpu_custom_call.1} parent=0 // pred_fallthru
    _
  %v26 = vld [vmem:[%s4] sm:$0xff]
  %v27 = vld [vmem:[%s4 + $0x8] sm:$0x3]
  %v28 = vld [vmem:[%s5] sm:$0x1f]
  %v29 = vld [vmem:[%s6] sm:$0x7f]
  %v30 = vld [vmem:[%s0] sm:$0xff]
  %v31 = vlaneseq
  %v32 = vand.u32 %v31, 127
  %33 = vset.pattern.permute.xlu0 0
  %34 = vperm.xlu0 %33, %v30
  %v35 = vpop.permute.xlu0 %34
  %vm36 = vcmp.eq.s32.totalorder %v35, %v32
  %v37 = vsel %vm36, 1, 0
  %v38 = vcvt.s32.f32 %v37
  %vm39 = vcmask 80896
  %v41 = vsel %vm39, %v38, 0
  %vm43 = vcmask 1041408
  %v45 = vsel %vm43, %v27, 0
  %47 = vmatpush.msra.mxu0 0.0
  %48 = vmatpush.msra.mxu0 0.0
  %49 = vmatpush.msra.mxu0 0.0
  %50 = vmatpush.msra.mxu0 0.0
  %51 = vmatpush.msra.mxu0 0.0
  %52 = vmatpush.msra.mxu0 0.0
  %53 = vmatpush.msra.mxu0 0.0
  %54 = vmatpush.msra.mxu0 0.0
  %55 = vmatpush.msra.mxu0 0.0
  %56 = vmatpush.msra.mxu0 0.0
  %57 = vmatpush.msra.mxu0 0.0
  %58 = vmatpush.msra.mxu0 0.0
  %59 = vmatpush.msra.mxu0 0.0
  %60 = vmatpush.msra.mxu0 0.0
  %61 = vmatpush.msra.mxu0 %v45
  %62 = vmatpush.msra.mxu0 %v26
  %63 = vmatmul.f32.gmra.mxu0 %v41
  %v64 = vpop.f32.mrf.mxu0
  %v65 = vadd.f32 0.0, %v64
  %66 = vdwg.mxu0
  %v67 = vld [vmem:[%s1] sm:$0xff]
  %68 = vset.pattern.permute.xlu0 0
  %69 = vperm.xlu0 %68, %v67
  %v70 = vpop.permute.xlu0 %69
  %vm71 = vcmp.eq.s32.totalorder %v70, %v32
  %v72 = vsel %vm71, 1, 0
  %v73 = vcvt.s32.f32 %v72
  %vm74 = vcmask 39936
  %v76 = vsel %vm74, %v73, 0
  %vm78 = vcmask 1044480
  %v80 = vsel %vm78, %v28, 0
  %82 = vmatpush.msra.mxu0 0.0
  %83 = vmatpush.msra.mxu0 0.0
  %84 = vmatpush.msra.mxu0 0.0
  %85 = vmatpush.msra.mxu0 0.0
  %86 = vmatpush.msra.mxu0 0.0
  %87 = vmatpush.msra.mxu0 0.0
  %88 = vmatpush.msra.mxu0 0.0
  %89 = vmatpush.msra.mxu0 0.0
  %90 = vmatpush.msra.mxu0 0.0
  %91 = vmatpush.msra.mxu0 0.0
  %92 = vmatpush.msra.mxu0 0.0
  %93 = vmatpush.msra.mxu0 0.0
  %94 = vmatpush.msra.mxu0 0.0
  %95 = vmatpush.msra.mxu0 0.0
  %96 = vmatpush.msra.mxu0 0.0
  %97 = vmatpush.msra.mxu0 %v80
  %98 = vmatmul.f32.gmra.mxu0 %v76
  %v99 = vpop.f32.mrf.mxu0
  %v100 = vadd.f32 0.0, %v99
  %101 = vdwg.mxu0
  %v102 = vld [vmem:[%s2] sm:$0xff]
  %103 = vset.pattern.permute.xlu0 0
  %104 = vperm.xlu0 %103, %v102
  %v105 = vpop.permute.xlu0 %104
  %vm106 = vcmp.eq.s32.totalorder %v105, %v32
  %v107 = vsel %vm106, 1, 0
  %v108 = vcvt.s32.f32 %v107
  %v110 = vsel %vm39, %v108, 0
  %112 = vmatpush.msra.mxu0 0.0
  %113 = vmatpush.msra.mxu0 0.0
  %114 = vmatpush.msra.mxu0 0.0
  %115 = vmatpush.msra.mxu0 0.0
  %116 = vmatpush.msra.mxu0 0.0
  %117 = vmatpush.msra.mxu0 0.0
  %118 = vmatpush.msra.mxu0 0.0
  %119 = vmatpush.msra.mxu0 0.0
  %120 = vmatpush.msra.mxu0 0.0
  %121 = vmatpush.msra.mxu0 0.0
  %122 = vmatpush.msra.mxu0 0.0
  %123 = vmatpush.msra.mxu0 0.0
  %124 = vmatpush.msra.mxu0 0.0
  %125 = vmatpush.msra.mxu0 0.0
  %126 = vmatpush.msra.mxu0 %v45
  %127 = vmatpush.msra.mxu0 %v26
  %128 = vmatmul.f32.gmra.mxu0 %v110
  %v129 = vpop.f32.mrf.mxu0
  %v130 = vadd.f32 0.0, %v129
  %131 = vdwg.mxu0
  %v132 = vld [vmem:[%s3] sm:$0xff]
  %133 = vset.pattern.permute.xlu0 0
  %134 = vperm.xlu0 %133, %v132
  %v135 = vpop.permute.xlu0 %134
  %vm136 = vcmp.eq.s32.totalorder %v135, %v32
  %v137 = vsel %vm136, 1, 0
  %v138 = vcvt.s32.f32 %v137
  %vm139 = vcmask 56320
  %v141 = vsel %vm139, %v138, 0
  %vm143 = vcmask 1046528
  %v145 = vsel %vm143, %v29, 0
  %147 = vmatpush.msra.mxu0 0.0
  %148 = vmatpush.msra.mxu0 0.0
  %149 = vmatpush.msra.mxu0 0.0
  %150 = vmatpush.msra.mxu0 0.0
  %151 = vmatpush.msra.mxu0 0.0
  %152 = vmatpush.msra.mxu0 0.0
  %153 = vmatpush.msra.mxu0 0.0
  %154 = vmatpush.msra.mxu0 0.0
  %155 = vmatpush.msra.mxu0 0.0
  %156 = vmatpush.msra.mxu0 0.0
  %157 = vmatpush.msra.mxu0 0.0
  %158 = vmatpush.msra.mxu0 0.0
  %159 = vmatpush.msra.mxu0 0.0
  %160 = vmatpush.msra.mxu0 0.0
  %161 = vmatpush.msra.mxu0 0.0
  %162 = vmatpush.msra.mxu0 %v145
  %163 = vmatmul.f32.gmra.mxu0 %v141
  %v164 = vpop.f32.mrf.mxu0
  %v165 = vadd.f32 0.0, %v164
  %166 = vdwg.mxu0
  %v167 = vmul.f32 %v65, %v100
  %v168 = vmul.f32 %v167, %v130
  %v169 = vmul.f32 %v168, %v165
  %vm170 = vcmask 195584
  %v171 = vsel %vm170, %v169, 0.0
  %172 = vadd.xlane.f32.xlu0 %v171
  %v173 = vpop.xlane.xlu0 %172
  %175 = vrot.lane.b32.xlu0 %v168, 104
  %v176 = vpop.permute.xlu0 %175
  %vm178 = vcmask 64512
  %v179 = vsel %vm178, %v176, 0.0
  %180 = vadd.xlane.f32.xlu0 %v179
  %v181 = vpop.xlane.xlu0 %180
  %v182 = vadd.f32 %v173, %v181
  %vm183 = vcmask 7168
  %184 = vst.msk [vmem:[%s7] sm:$0xff] %vm183, %v182
  // Predicated region
  $region30: #{tpu_custom_call.1} parent=0 // pred_check
    _
  $region31: #{tpu_custom_call.1} parent=0 // pred_check_branch
    %186 = sbr.rel (0) target = $region33
  $region32: #{tpu_custom_call.1} parent=0 // pred_region
    _
  $region33: #{tpu_custom_call.1} parent=0 // pred_fallthru
    _
  // Predicated region
  $region34: #{tpu_custom_call.1} parent=0 // pred_check
    _
  $region35: #{tpu_custom_call.1} parent=0 // pred_check_branch
    %188 = sbr.rel (0) target = $region37
  $region36: #{tpu_custom_call.1} parent=0 // pred_region
    _
  $region37: #{tpu_custom_call.1} parent=0 // pred_fallthru
    _

</llo_original>
